<compile_context>
chip_gen: v7x
topology: tpu7x:2x2x1
jax: 0.10.0
libtpu: 0.0.40
codegen_flags: <defaults>
</compile_context>

<pallas_src>
import jax
import jax.numpy as jnp
from jax.experimental import pallas as pl
from jax.experimental.pallas import tpu as pltpu


# ----------------------------------------------------------------------------- activations
def _mish_fast(x):
    # mish(x) = x * tanh(softplus(x)) = x * n / (n + 2),  n = e^x (e^x + 2)
    # 1 exp (EUP) + 1 approx reciprocal (EUP vrcp); no cancelling subtraction.
    e = jnp.exp(jnp.minimum(x, 20.0))
    n = e * (e + 2.0)
    t = n * pl.reciprocal(n + 2.0, approx=True)
    # For x > 20 the ratio is 1 to f32 precision; keep the guard explicit.
    return x * jnp.where(x > 20.0, 1.0, t)


def _mish_ref(x):
    # Pure-JAX reference mish (stable softplus + tanh), used only for checking.
    sp = jnp.where(x > 20.0, x, jnp.log1p(jnp.exp(jnp.minimum(x, 20.0))))
    return x * jnp.tanh(sp)


# ----------------------------------------------------------------------------- kernel body
def _critic_kernel(s_ref, a_ref, w1s_ref, w1a_ref, b1_ref, w2_ref, b2_ref,
                   w3_ref, b3_ref, w4_ref, out_ref):
    # One grid step = one batch tile; both Q-heads computed together
    # (fused width 2H: W1 lane-concatenated, W2/W3 block-diagonal).
    mm_dt = w2_ref.dtype                      # f32 or bf16 (MXU operand dtype)
    s = s_ref[...].astype(mm_dt)
    a = a_ref[...].astype(mm_dt)

    # Layer 1: split matmul replaces the wrapper-side concat([state, action]).
    h = jnp.dot(s, w1s_ref[...], preferred_element_type=jnp.float32)
    h = h + jnp.dot(a, w1a_ref[...], preferred_element_type=jnp.float32)
    h = _mish_fast(h + b1_ref[...])
    # Layer 2 (block-diagonal over the two heads)
    h = _mish_fast(jnp.dot(h.astype(mm_dt), w2_ref[...],
                           preferred_element_type=jnp.float32) + b2_ref[...])
    # Layer 3
    h = _mish_fast(jnp.dot(h.astype(mm_dt), w3_ref[...],
                           preferred_element_type=jnp.float32) + b3_ref[...])

    # Output layer (2H -> 2): VPU multiply + lane reduce, one row per head
    # (w4 rows are zero-padded outside their own head's columns).
    w4 = w4_ref[...]
    q1 = jnp.sum(h * w4[0:1, :], axis=-1, keepdims=True)
    q2 = jnp.sum(h * w4[1:2, :], axis=-1, keepdims=True)
    out_ref[...] = jnp.concatenate([q1, q2], axis=-1).astype(out_ref.dtype)


# ----------------------------------------------------------------------------- wrapper
def critic_forward(state, action, params, *, batch_tile=2048, matmul_dtype=None):
    """Equivalent of Critic.forward: returns (q1, q2), each (B, 1)."""
    state = state.astype(jnp.float32)
    action = action.astype(jnp.float32)
    B, S = state.shape
    A = action.shape[1]
    N2 = params["w2"].shape[-1]               # fused width = 2 * hidden_dim

    if matmul_dtype is None:
        matmul_dtype = jnp.float32
    w1s = params["w1s"].astype(matmul_dtype)
    w1a = params["w1a"].astype(matmul_dtype)
    w2 = params["w2"].astype(matmul_dtype)
    w3 = params["w3"].astype(matmul_dtype)

    if B <= batch_tile:                        # whole batch in one tile
        TB = max(8, ((B + 7) // 8) * 8)        # keep sublane-aligned
        nbt = 1
    else:
        TB = batch_tile                        # 2048: multiple of 8
        nbt = pl.cdiv(B, TB)
    Bp = nbt * TB
    if Bp != B:
        state = jnp.pad(state, ((0, Bp - B), (0, 0)))
        action = jnp.pad(action, ((0, Bp - B), (0, 0)))

    # Whole-array weight blocks: constant index_map -> resident across batch tiles.
    def whole(shape):
        return pl.BlockSpec(shape, lambda b: (0,) * len(shape))

    out = pl.pallas_call(
        _critic_kernel,
        out_shape=jax.ShapeDtypeStruct((Bp, 2), jnp.float32),
        grid_spec=pltpu.PrefetchScalarGridSpec(
            num_scalar_prefetch=0,
            grid=(nbt,),                                    # batch tiles only
            in_specs=[
                pl.BlockSpec((TB, S), lambda b: (b, 0)),    # state tile
                pl.BlockSpec((TB, A), lambda b: (b, 0)),    # action tile
                whole((S, N2)),                             # w1_state  (fused)
                whole((A, N2)),                             # w1_action (fused)
                whole((1, N2)),                             # b1
                whole((N2, N2)),                            # w2 (block-diag)
                whole((1, N2)),                             # b2
                whole((N2, N2)),                            # w3 (block-diag)
                whole((1, N2)),                             # b3
                whole((2, N2)),                             # w4 rows (zero-padded)
            ],
            out_specs=pl.BlockSpec((TB, 2), lambda b: (b, 0)),
        ),
        compiler_params=pltpu.CompilerParams(
            dimension_semantics=("parallel",)),
    )(state, action, w1s, w1a, params["b1"], w2, params["b2"],
      w3, params["b3"], params["w4"])

    out = out[:B] + params["b4"]               # fold final bias here (no (1,1) VMEM block)
    return out[:, 0:1], out[:, 1:2]


def critic_q_min(state, action, params):
    q1, q2 = critic_forward(state, action, params)
    return jnp.minimum(q1, q2)


# ----------------------------------------------------------------------------- init / reference
def _init_linear(key, fan_in, fan_out):
    # Mimics torch.nn.Linear default init: U(-1/sqrt(fan_in), +1/sqrt(fan_in)).
    kw, kb = jax.random.split(key)
    bound = float(fan_in) ** -0.5
    w = jax.random.uniform(kw, (fan_in, fan_out), jnp.float32, -bound, bound)
    b = jax.random.uniform(kb, (1, fan_out), jnp.float32, -bound, bound)
    return w, b


def init_critic_params(key, state_dim, action_dim, hidden_dim):
    """Init two independent heads, then fuse them into one set of kernel weights."""
    d_in = state_dim + action_dim
    keys = jax.random.split(key, 8)

    def head(ks):
        w1, b1 = _init_linear(ks[0], d_in, hidden_dim)
        w2, b2 = _init_linear(ks[1], hidden_dim, hidden_dim)
        w3, b3 = _init_linear(ks[2], hidden_dim, hidden_dim)
        w4, b4 = _init_linear(ks[3], hidden_dim, 1)
        return w1, b1, w2, b2, w3, b3, w4, b4

    w1_1, b1_1, w2_1, b2_1, w3_1, b3_1, w4_1, b4_1 = head(keys[:4])
    w1_2, b1_2, w2_2, b2_2, w3_2, b3_2, w4_2, b4_2 = head(keys[4:])

    H = hidden_dim
    zHH = jnp.zeros((H, H), jnp.float32)
    z1H = jnp.zeros((1, H), jnp.float32)

    def blkdiag(a, b):
        return jnp.concatenate(
            [jnp.concatenate([a, zHH], axis=1),
             jnp.concatenate([zHH, b], axis=1)], axis=0)

    w1 = jnp.concatenate([w1_1, w1_2], axis=1)          # (d_in, 2H)
    return dict(
        w1s=w1[:state_dim], w1a=w1[state_dim:],          # W1 split once, here
        b1=jnp.concatenate([b1_1, b1_2], axis=1),        # (1, 2H)
        w2=blkdiag(w2_1, w2_2),                          # (2H, 2H)
        b2=jnp.concatenate([b2_1, b2_2], axis=1),
        w3=blkdiag(w3_1, w3_2),
        b3=jnp.concatenate([b3_1, b3_2], axis=1),
        w4=jnp.concatenate(                              # (2, 2H): zero-padded rows
            [jnp.concatenate([w4_1.T, z1H], axis=1),
             jnp.concatenate([z1H, w4_2.T], axis=1)], axis=0),
        b4=jnp.concatenate([b4_1, b4_2], axis=1),        # (1, 2), added in wrapper
    )


def _reference_forward(state, action, p):
    """Pure-JAX reference identical to the PyTorch Critic.forward semantics."""
    N2 = p["w2"].shape[0]
    H = N2 // 2
    x = jnp.concatenate([state, action], axis=-1).astype(jnp.float32)
    w1 = jnp.concatenate([p["w1s"], p["w1a"]], axis=0)

    def head_fn(i):
        sl = slice(i * H, (i + 1) * H)
        z = _mish_ref(x @ w1[:, sl] + p["b1"][:, sl])
        z = _mish_ref(z @ p["w2"][sl, sl] + p["b2"][:, sl])
        z = _mish_ref(z @ p["w3"][sl, sl] + p["b3"][:, sl])
        return z @ p["w4"][i, sl][:, None] + p["b4"][:, i:i + 1]

    return head_fn(0), head_fn(1)


# ----------------------------------------------------------------------------- demo / check
if __name__ == "__main__":
    B, STATE_DIM, ACTION_DIM, HIDDEN = 8, 12, 4, 32

    key = jax.random.PRNGKey(0)
    k_state, k_action, k_params = jax.random.split(key, 3)

    state = jax.random.normal(k_state, (B, STATE_DIM), jnp.float32)
    action = jax.random.normal(k_action, (B, ACTION_DIM), jnp.float32)
    params = init_critic_params(k_params, STATE_DIM, ACTION_DIM, HIDDEN)

    fwd = jax.jit(critic_forward, static_argnames=("batch_tile", "matmul_dtype"))

    # f32 MXU-operand path
    q1, q2 = fwd(state, action, params)
    jax.block_until_ready((q1, q2))
    r1, r2 = _reference_forward(state, action, params)
    assert q1.shape == (B, 1) and q2.shape == (B, 1)
    assert jnp.allclose(q1, r1, atol=5e-3, rtol=5e-3)
    assert jnp.allclose(q2, r2, atol=5e-3, rtol=5e-3)

    # q_min equivalent (Critic.q_min)
    q_min = jax.jit(critic_q_min)(state, action, params)
    jax.block_until_ready(q_min)
    assert jnp.allclose(q_min, jnp.minimum(r1, r2), atol=5e-3, rtol=5e-3)

    # bf16 MXU-operand path (production compute lever); looser tolerance.
    q1b, q2b = fwd(state, action, params, matmul_dtype=jnp.bfloat16)
    jax.block_until_ready((q1b, q2b))
    assert jnp.allclose(q1b, r1, atol=5e-2, rtol=5e-2)
    assert jnp.allclose(q2b, r2, atol=5e-2, rtol=5e-2)

    # batch-padding path (B not a multiple of 8)
    q1p, q2p = fwd(state[:5], action[:5], params)
    jax.block_until_ready((q1p, q2p))
    assert jnp.allclose(q1p, r1[:5], atol=5e-3, rtol=5e-3)
    assert jnp.allclose(q2p, r2[:5], atol=5e-3, rtol=5e-3)

    print("KERNEL_OK")
</pallas_src>

<mosaic_0001>
module attributes {stable_mosaic.version = 11 : i64} {
  func.func @_critic_kernel(%arg0: i32, %arg1: memref<8x12xf32, #tpu.memory_space<vmem>>, %arg2: memref<8x4xf32, #tpu.memory_space<vmem>>, %arg3: memref<12x64xf32, #tpu.memory_space<vmem>>, %arg4: memref<4x64xf32, #tpu.memory_space<vmem>>, %arg5: memref<1x64xf32, #tpu.memory_space<vmem>>, %arg6: memref<64x64xf32, #tpu.memory_space<vmem>>, %arg7: memref<1x64xf32, #tpu.memory_space<vmem>>, %arg8: memref<64x64xf32, #tpu.memory_space<vmem>>, %arg9: memref<1x64xf32, #tpu.memory_space<vmem>>, %arg10: memref<2x64xf32, #tpu.memory_space<vmem>>, %arg11: memref<8x2xf32, #tpu.memory_space<vmem>>) attributes {dimension_semantics = [#tpu.dimension_semantics<parallel>], iteration_bounds = array<i64: 1>, scalar_prefetch = 0 : i64, scratch_operands = 0 : i64, tpu.core_type = #tpu.core_type<tc>, window_params = [{transform_indices = @transform_0, window_bounds = array<i64: 8, 12>}, {transform_indices = @transform_1, window_bounds = array<i64: 8, 4>}, {pipeline_mode = #tpu.pipeline_mode<synchronous>, transform_indices = @transform_2, window_bounds = array<i64: 12, 64>}, {pipeline_mode = #tpu.pipeline_mode<synchronous>, transform_indices = @transform_3, window_bounds = array<i64: 4, 64>}, {pipeline_mode = #tpu.pipeline_mode<synchronous>, transform_indices = @transform_4, window_bounds = array<i64: 1, 64>}, {pipeline_mode = #tpu.pipeline_mode<synchronous>, transform_indices = @transform_5, window_bounds = array<i64: 64, 64>}, {pipeline_mode = #tpu.pipeline_mode<synchronous>, transform_indices = @transform_6, window_bounds = array<i64: 1, 64>}, {pipeline_mode = #tpu.pipeline_mode<synchronous>, transform_indices = @transform_7, window_bounds = array<i64: 64, 64>}, {pipeline_mode = #tpu.pipeline_mode<synchronous>, transform_indices = @transform_8, window_bounds = array<i64: 1, 64>}, {pipeline_mode = #tpu.pipeline_mode<synchronous>, transform_indices = @transform_9, window_bounds = array<i64: 2, 64>}, {transform_indices = @transform_10, window_bounds = array<i64: 8, 2>}]} {
    %c0 = arith.constant 0 : index
    %c0_0 = arith.constant 0 : index
    %0 = vector.load %arg1[%c0, %c0_0] : memref<8x12xf32, #tpu.memory_space<vmem>>, vector<8x12xf32>
    %c0_1 = arith.constant 0 : index
    %c0_2 = arith.constant 0 : index
    %1 = vector.load %arg2[%c0_1, %c0_2] : memref<8x4xf32, #tpu.memory_space<vmem>>, vector<8x4xf32>
    %c0_3 = arith.constant 0 : index
    %c0_4 = arith.constant 0 : index
    %2 = vector.load %arg3[%c0_3, %c0_4] : memref<12x64xf32, #tpu.memory_space<vmem>>, vector<12x64xf32>
    %cst = arith.constant dense<0.000000e+00> : vector<8x64xf32>
    %3 = tpu.matmul %0, %2, %cst {dimension_numbers = #tpu.dot_dimension_numbers<[1], [0], [0], [1], [0, 0, 1, 1], [], []>} : vector<8x12xf32>, vector<12x64xf32>, vector<8x64xf32> -> vector<8x64xf32>
    %c0_5 = arith.constant 0 : index
    %c0_6 = arith.constant 0 : index
    %4 = vector.load %arg4[%c0_5, %c0_6] : memref<4x64xf32, #tpu.memory_space<vmem>>, vector<4x64xf32>
    %cst_7 = arith.constant dense<0.000000e+00> : vector<8x64xf32>
    %5 = tpu.matmul %1, %4, %cst_7 {dimension_numbers = #tpu.dot_dimension_numbers<[1], [0], [0], [1], [0, 0, 1, 1], [], []>} : vector<8x4xf32>, vector<4x64xf32>, vector<8x64xf32> -> vector<8x64xf32>
    %6 = arith.addf %3, %5 : vector<8x64xf32>
    %c0_8 = arith.constant 0 : index
    %c0_9 = arith.constant 0 : index
    %7 = vector.load %arg5[%c0_8, %c0_9] : memref<1x64xf32, #tpu.memory_space<vmem>>, vector<1x64xf32>
    %8 = vector.broadcast %7 : vector<1x64xf32> to vector<8x64xf32>
    %9 = arith.addf %6, %8 : vector<8x64xf32>
    %cst_10 = arith.constant 2.000000e+01 : f32
    %10 = vector.broadcast %cst_10 : f32 to vector<8x64xf32>
    %11 = arith.minimumf %9, %10 : vector<8x64xf32>
    %12 = math.exp %11 : vector<8x64xf32>
    %cst_11 = arith.constant 2.000000e+00 : f32
    %13 = vector.broadcast %cst_11 : f32 to vector<8x64xf32>
    %14 = arith.addf %12, %13 : vector<8x64xf32>
    %15 = arith.mulf %12, %14 : vector<8x64xf32>
    %cst_12 = arith.constant 2.000000e+00 : f32
    %16 = vector.broadcast %cst_12 : f32 to vector<8x64xf32>
    %17 = arith.addf %15, %16 : vector<8x64xf32>
    %18 = tpu.reciprocal %17 {approx = true} : vector<8x64xf32> -> vector<8x64xf32>
    %19 = arith.mulf %15, %18 : vector<8x64xf32>
    %cst_13 = arith.constant 2.000000e+01 : f32
    %20 = vector.broadcast %cst_13 : f32 to vector<8x64xf32>
    %21 = arith.cmpf ogt, %9, %20 : vector<8x64xf32>
    %cst_14 = arith.constant 1.000000e+00 : f32
    %22 = vector.broadcast %cst_14 : f32 to vector<8x64xf32>
    %23 = arith.select %21, %22, %19 : vector<8x64xi1>, vector<8x64xf32>
    %24 = arith.mulf %9, %23 : vector<8x64xf32>
    %c0_15 = arith.constant 0 : index
    %c0_16 = arith.constant 0 : index
    %25 = vector.load %arg6[%c0_15, %c0_16] : memref<64x64xf32, #tpu.memory_space<vmem>>, vector<64x64xf32>
    %cst_17 = arith.constant dense<0.000000e+00> : vector<8x64xf32>
    %26 = tpu.matmul %24, %25, %cst_17 {dimension_numbers = #tpu.dot_dimension_numbers<[1], [0], [0], [1], [0, 0, 1, 1], [], []>} : vector<8x64xf32>, vector<64x64xf32>, vector<8x64xf32> -> vector<8x64xf32>
    %c0_18 = arith.constant 0 : index
    %c0_19 = arith.constant 0 : index
    %27 = vector.load %arg7[%c0_18, %c0_19] : memref<1x64xf32, #tpu.memory_space<vmem>>, vector<1x64xf32>
    %28 = vector.broadcast %27 : vector<1x64xf32> to vector<8x64xf32>
    %29 = arith.addf %26, %28 : vector<8x64xf32>
    %cst_20 = arith.constant 2.000000e+01 : f32
    %30 = vector.broadcast %cst_20 : f32 to vector<8x64xf32>
    %31 = arith.minimumf %29, %30 : vector<8x64xf32>
    %32 = math.exp %31 : vector<8x64xf32>
    %cst_21 = arith.constant 2.000000e+00 : f32
    %33 = vector.broadcast %cst_21 : f32 to vector<8x64xf32>
    %34 = arith.addf %32, %33 : vector<8x64xf32>
    %35 = arith.mulf %32, %34 : vector<8x64xf32>
    %cst_22 = arith.constant 2.000000e+00 : f32
    %36 = vector.broadcast %cst_22 : f32 to vector<8x64xf32>
    %37 = arith.addf %35, %36 : vector<8x64xf32>
    %38 = tpu.reciprocal %37 {approx = true} : vector<8x64xf32> -> vector<8x64xf32>
    %39 = arith.mulf %35, %38 : vector<8x64xf32>
    %cst_23 = arith.constant 2.000000e+01 : f32
    %40 = vector.broadcast %cst_23 : f32 to vector<8x64xf32>
    %41 = arith.cmpf ogt, %29, %40 : vector<8x64xf32>
    %cst_24 = arith.constant 1.000000e+00 : f32
    %42 = vector.broadcast %cst_24 : f32 to vector<8x64xf32>
    %43 = arith.select %41, %42, %39 : vector<8x64xi1>, vector<8x64xf32>
    %44 = arith.mulf %29, %43 : vector<8x64xf32>
    %c0_25 = arith.constant 0 : index
    %c0_26 = arith.constant 0 : index
    %45 = vector.load %arg8[%c0_25, %c0_26] : memref<64x64xf32, #tpu.memory_space<vmem>>, vector<64x64xf32>
    %cst_27 = arith.constant dense<0.000000e+00> : vector<8x64xf32>
    %46 = tpu.matmul %44, %45, %cst_27 {dimension_numbers = #tpu.dot_dimension_numbers<[1], [0], [0], [1], [0, 0, 1, 1], [], []>} : vector<8x64xf32>, vector<64x64xf32>, vector<8x64xf32> -> vector<8x64xf32>
    %c0_28 = arith.constant 0 : index
    %c0_29 = arith.constant 0 : index
    %47 = vector.load %arg9[%c0_28, %c0_29] : memref<1x64xf32, #tpu.memory_space<vmem>>, vector<1x64xf32>
    %48 = vector.broadcast %47 : vector<1x64xf32> to vector<8x64xf32>
    %49 = arith.addf %46, %48 : vector<8x64xf32>
    %cst_30 = arith.constant 2.000000e+01 : f32
    %50 = vector.broadcast %cst_30 : f32 to vector<8x64xf32>
    %51 = arith.minimumf %49, %50 : vector<8x64xf32>
    %52 = math.exp %51 : vector<8x64xf32>
    %cst_31 = arith.constant 2.000000e+00 : f32
    %53 = vector.broadcast %cst_31 : f32 to vector<8x64xf32>
    %54 = arith.addf %52, %53 : vector<8x64xf32>
    %55 = arith.mulf %52, %54 : vector<8x64xf32>
    %cst_32 = arith.constant 2.000000e+00 : f32
    %56 = vector.broadcast %cst_32 : f32 to vector<8x64xf32>
    %57 = arith.addf %55, %56 : vector<8x64xf32>
    %58 = tpu.reciprocal %57 {approx = true} : vector<8x64xf32> -> vector<8x64xf32>
    %59 = arith.mulf %55, %58 : vector<8x64xf32>
    %cst_33 = arith.constant 2.000000e+01 : f32
    %60 = vector.broadcast %cst_33 : f32 to vector<8x64xf32>
    %61 = arith.cmpf ogt, %49, %60 : vector<8x64xf32>
    %cst_34 = arith.constant 1.000000e+00 : f32
    %62 = vector.broadcast %cst_34 : f32 to vector<8x64xf32>
    %63 = arith.select %61, %62, %59 : vector<8x64xi1>, vector<8x64xf32>
    %64 = arith.mulf %49, %63 : vector<8x64xf32>
    %c0_35 = arith.constant 0 : index
    %c0_36 = arith.constant 0 : index
    %65 = vector.load %arg10[%c0_35, %c0_36] : memref<2x64xf32, #tpu.memory_space<vmem>>, vector<2x64xf32>
    %66 = vector.extract_strided_slice %65 {offsets = [0, 0], sizes = [1, 64], strides = [1, 1]} : vector<2x64xf32> to vector<1x64xf32>
    %67 = vector.broadcast %66 : vector<1x64xf32> to vector<8x64xf32>
    %68 = arith.mulf %64, %67 : vector<8x64xf32>
    %cst_37 = arith.constant dense<0.000000e+00> : vector<8xf32>
    %69 = vector.multi_reduction <add>, %68, %cst_37 [1] : vector<8x64xf32> to vector<8xf32>
    %70 = vector.shape_cast %69 : vector<8xf32> to vector<8x1xf32>
    %71 = vector.extract_strided_slice %65 {offsets = [1, 0], sizes = [1, 64], strides = [1, 1]} : vector<2x64xf32> to vector<1x64xf32>
    %72 = vector.broadcast %71 : vector<1x64xf32> to vector<8x64xf32>
    %73 = arith.mulf %64, %72 : vector<8x64xf32>
    %cst_38 = arith.constant dense<0.000000e+00> : vector<8xf32>
    %74 = vector.multi_reduction <add>, %73, %cst_38 [1] : vector<8x64xf32> to vector<8xf32>
    %75 = vector.shape_cast %74 : vector<8xf32> to vector<8x1xf32>
    %76 = tpu.concatenate %70, %75 in 1 : vector<8x1xf32>, vector<8x1xf32> -> vector<8x2xf32>
    %c0_39 = arith.constant 0 : index
    %c0_40 = arith.constant 0 : index
    %77 = vector.load %arg11[%c0_39, %c0_40] : memref<8x2xf32, #tpu.memory_space<vmem>>, vector<8x2xf32>
    tpu.vector_store %arg11[%c0_39, %c0_40], %76 {strides = array<i32>} : memref<8x2xf32, #tpu.memory_space<vmem>>, vector<8x2xf32>,
    return
  }
  func.func @transform_0(%arg0: i32) -> (i32, i32) {
    %c0_i32 = arith.constant 0 : i32
    %c0_i32_0 = arith.constant 0 : i32
    return %arg0, %c0_i32 : i32, i32
  }
  func.func @transform_1(%arg0: i32) -> (i32, i32) {
    %c0_i32 = arith.constant 0 : i32
    %c0_i32_0 = arith.constant 0 : i32
    return %arg0, %c0_i32 : i32, i32
  }
  func.func @transform_2(%arg0: i32) -> (i32, i32) {
    %c0_i32 = arith.constant 0 : i32
    %c0_i32_0 = arith.constant 0 : i32
    %c0_i32_1 = arith.constant 0 : i32
    return %c0_i32, %c0_i32_0 : i32, i32
  }
  func.func @transform_3(%arg0: i32) -> (i32, i32) {
    %c0_i32 = arith.constant 0 : i32
    %c0_i32_0 = arith.constant 0 : i32
    %c0_i32_1 = arith.constant 0 : i32
    return %c0_i32, %c0_i32_0 : i32, i32
  }
  func.func @transform_4(%arg0: i32) -> (i32, i32) {
    %c0_i32 = arith.constant 0 : i32
    %c0_i32_0 = arith.constant 0 : i32
    %c0_i32_1 = arith.constant 0 : i32
    return %c0_i32, %c0_i32_0 : i32, i32
  }
  func.func @transform_5(%arg0: i32) -> (i32, i32) {
    %c0_i32 = arith.constant 0 : i32
    %c0_i32_0 = arith.constant 0 : i32
    %c0_i32_1 = arith.constant 0 : i32
    return %c0_i32, %c0_i32_0 : i32, i32
  }
  func.func @transform_6(%arg0: i32) -> (i32, i32) {
    %c0_i32 = arith.constant 0 : i32
    %c0_i32_0 = arith.constant 0 : i32
    %c0_i32_1 = arith.constant 0 : i32
    return %c0_i32, %c0_i32_0 : i32, i32
  }
  func.func @transform_7(%arg0: i32) -> (i32, i32) {
    %c0_i32 = arith.constant 0 : i32
    %c0_i32_0 = arith.constant 0 : i32
    %c0_i32_1 = arith.constant 0 : i32
    return %c0_i32, %c0_i32_0 : i32, i32
  }
  func.func @transform_8(%arg0: i32) -> (i32, i32) {
    %c0_i32 = arith.constant 0 : i32
    %c0_i32_0 = arith.constant 0 : i32
    %c0_i32_1 = arith.constant 0 : i32
    return %c0_i32, %c0_i32_0 : i32, i32
  }
  func.func @transform_9(%arg0: i32) -> (i32, i32) {
    %c0_i32 = arith.constant 0 : i32
    %c0_i32_0 = arith.constant 0 : i32
    %c0_i32_1 = arith.constant 0 : i32
    return %c0_i32, %c0_i32_0 : i32, i32
  }
  func.func @transform_10(%arg0: i32) -> (i32, i32) {
    %c0_i32 = arith.constant 0 : i32
    %c0_i32_0 = arith.constant 0 : i32
    return %arg0, %c0_i32 : i32, i32
  }
}

</mosaic_0001>

<llo_original>
// kernel: critic_forward.1
$region0: #{critic_forward.1}
  #allocation0 [shape = 'u32[]', space=smem, size = 0x4, offset = 0x4, fixed_abs, tag = 'smem constant byte address 0x4 - core index']
  #allocation1 [shape = 'u32[144,128]{1,0:T(1,128)}', space=vmem, size = 0x12000, scoped, tag = 'internal scratch']
  %s0 = inlined_call_operand.vmem [shape: f32[8,12], index: 0, kind: input, shape index: {}]
  %s1 = inlined_call_operand.vmem [shape: f32[8,4], index: 1, kind: input, shape index: {}]
  %s2 = inlined_call_operand.vmem [shape: f32[12,64], index: 2, kind: input, shape index: {}]
  %s3 = inlined_call_operand.vmem [shape: f32[4,64], index: 3, kind: input, shape index: {}]
  %s4 = inlined_call_operand.hbm [shape: f32[1,64], index: 4, kind: input, shape index: {}]
  %s5 = inlined_call_operand.hbm [shape: f32[64,64], index: 5, kind: input, shape index: {}]
  %s6 = inlined_call_operand.hbm [shape: f32[1,64], index: 6, kind: input, shape index: {}]
  %s7 = inlined_call_operand.hbm [shape: f32[64,64], index: 7, kind: input, shape index: {}]
  %s8 = inlined_call_operand.hbm [shape: f32[1,64], index: 8, kind: input, shape index: {}]
  %s9 = inlined_call_operand.vmem [shape: f32[2,64], index: 9, kind: input, shape index: {}]
  %s10 = inlined_call_operand.vmem [shape: f32[8,2], index: 10, kind: output, shape index: {}]
  %s11 = sld [smem:[#allocation0]]
  $region70: #{critic_forward.1} parent=0
    _
  %s13 = ssub.s32 1, %s11
  %s14 = scalar_select 0, %s13, %s11
  $region1: #{critic_forward.1} parent=0
    #allocation2 [shape = 'u8[512]{0}', space=vmem, size = 0x400, scoped, tag = 'input window, operand 4, single buffered']
    #allocation3 [shape = 's32[1]{0}', space=sflag, size = 0x4, scoped, tag = 'scoped memory for critic_forward.1']
    #allocation4 [shape = 'u8[32768]{0}', space=vmem, size = 0x8000, scoped, tag = 'input window, operand 5, single buffered']
    #allocation5 [shape = 's32[1]{0}', space=sflag, size = 0x4, scoped, tag = 'scoped memory for critic_forward.1']
    #allocation6 [shape = 'u8[512]{0}', space=vmem, size = 0x400, scoped, tag = 'input window, operand 6, single buffered']
    #allocation7 [shape = 'u8[32768]{0}', space=vmem, size = 0x8000, scoped, tag = 'input window, operand 7, single buffered']
    #allocation8 [shape = 's32[1]{0}', space=sflag, size = 0x4, scoped, tag = 'scoped memory for critic_forward.1']
    #allocation9 [shape = 'u8[512]{0}', space=vmem, size = 0x400, scoped, tag = 'input window, operand 8, single buffered']
    %15 = vsyncpa [#allocation3], 0
    %16 = vsyncpa [#allocation5], 0
    %17 = vsyncpa [#allocation8], 0
    // Predicated region
    $region2: #{critic_forward.1} parent=1 // pred_check
      _
    $region3: #{critic_forward.1} parent=1 // pred_check_branch
      %19 = sbr.rel (0) target = $region5
    $region4: #{critic_forward.1} parent=1 // pred_region
      _
    $region5: #{critic_forward.1} parent=1 // pred_fallthru
      _
    // Predicated region
    $region6: #{critic_forward.1} parent=1 // pred_check
      _
    $region7: #{critic_forward.1} parent=1 // pred_check_branch
      %21 = sbr.rel (0) target = $region9
    $region8: #{critic_forward.1} parent=1 // pred_region
      _
    $region9: #{critic_forward.1} parent=1 // pred_fallthru
      _
    // Predicated region
    $region10: #{critic_forward.1} parent=1 // pred_check
      _
    $region11: #{critic_forward.1} parent=1 // pred_check_branch
      %23 = sbr.rel (0) target = $region13
    $region12: #{critic_forward.1} parent=1 // pred_region
      _
    $region13: #{critic_forward.1} parent=1 // pred_fallthru
      _
    // Predicated region
    $region14: #{critic_forward.1} parent=1 // pred_check
      _
    $region15: #{critic_forward.1} parent=1 // pred_check_branch
      %25 = sbr.rel (0) target = $region17
    $region16: #{critic_forward.1} parent=1 // pred_region
      _
    $region17: #{critic_forward.1} parent=1 // pred_fallthru
      _
    // Predicated region
    $region18: #{critic_forward.1} parent=1 // pred_check
      _
    $region19: #{critic_forward.1} parent=1 // pred_check_branch
      %27 = sbr.rel (0) target = $region21
    $region20: #{critic_forward.1} parent=1 // pred_region
      %s29 = ssub.s32 16, 16
      %30 = vsyncadd [#allocation3], %s29
      %s32 = sshll.u32 [#allocation2], 4
      %s33 = int_to_ptr.vmem [resolvable:$true] %s32
      %35 = dma.hbm_to_vmem [thread:$0]  %s4, 16, %s33, [#allocation3]
    $region21: #{critic_forward.1} parent=1 // pred_fallthru
      _
    // Predicated region
    $region22: #{critic_forward.1} parent=1 // pred_check
      _
    $region23: #{critic_forward.1} parent=1 // pred_check_branch
      %37 = sbr.rel (0) target = $region25
    $region24: #{critic_forward.1} parent=1 // pred_region
      %s39 = ssub.s32 1024, 1024
      %40 = vsyncadd [#allocation5], %s39
      %s41 = sshll.u32 [#allocation4], 4
      %s42 = int_to_ptr.vmem [resolvable:$true] %s41
      %47 = dma.hbm_to_vmem [thread:$0]  %s5, 1024, %s42, [#allocation5], 128, 128, 8
    $region25: #{critic_forward.1} parent=1 // pred_fallthru
      _
    // Predicated region
    $region26: #{critic_forward.1} parent=1 // pred_check
      _
    $region27: #{critic_forward.1} parent=1 // pred_check_branch
      %49 = sbr.rel (0) target = $region29
    $region28: #{critic_forward.1} parent=1 // pred_region
      %s51 = ssub.s32 16, 16
      %52 = vsyncadd [#allocation5], %s51
      %s54 = sshll.u32 [#allocation6], 4
      %s55 = int_to_ptr.vmem [resolvable:$true] %s54
      %57 = dma.hbm_to_vmem [thread:$0]  %s6, 16, %s55, [#allocation5]
    $region29: #{critic_forward.1} parent=1 // pred_fallthru
      _
    // Predicated region
    $region30: #{critic_forward.1} parent=1 // pred_check
      _
    $region31: #{critic_forward.1} parent=1 // pred_check_branch
      %59 = sbr.rel (0) target = $region33
    $region32: #{critic_forward.1} parent=1 // pred_region
      %s61 = ssub.s32 1024, 1024
      %62 = vsyncadd [#allocation8], %s61
      %s63 = sshll.u32 [#allocation7], 4
      %s64 = int_to_ptr.vmem [resolvable:$true] %s63
      %69 = dma.hbm_to_vmem [thread:$0]  %s7, 1024, %s64, [#allocation8], 128, 128, 8
    $region33: #{critic_forward.1} parent=1 // pred_fallthru
      _
    // Predicated region
    $region34: #{critic_forward.1} parent=1 // pred_check
      _
    $region35: #{critic_forward.1} parent=1 // pred_check_branch
      %71 = sbr.rel (0) target = $region37
    $region36: #{critic_forward.1} parent=1 // pred_region
      %s73 = ssub.s32 16, 16
      %74 = vsyncadd [#allocation8], %s73
      %s76 = sshll.u32 [#allocation9], 4
      %s77 = int_to_ptr.vmem [resolvable:$true] %s76
      %79 = dma.hbm_to_vmem [thread:$0]  %s8, 16, %s77, [#allocation8]
    $region37: #{critic_forward.1} parent=1 // pred_fallthru
      _
    // Predicated region
    $region38: #{critic_forward.1} parent=1 // pred_check
      _
    $region39: #{critic_forward.1} parent=1 // pred_check_branch
      %81 = sbr.rel (0) target = $region41
    $region40: #{critic_forward.1} parent=1 // pred_region
      _
    $region41: #{critic_forward.1} parent=1 // pred_fallthru
      _
    // Predicated region
    $region42: #{critic_forward.1} parent=1 // pred_check
      _
    $region43: #{critic_forward.1} parent=1 // pred_check_branch
      %83 = sbr.rel (0) target = $region45
    $region44: #{critic_forward.1} parent=1 // pred_region
      %84 = dma.done [#allocation3], 16
    $region45: #{critic_forward.1} parent=1 // pred_fallthru
      _
    // Predicated region
    $region46: #{critic_forward.1} parent=1 // pred_check
      _
    $region47: #{critic_forward.1} parent=1 // pred_check_branch
      %86 = sbr.rel (0) target = $region49
    $region48: #{critic_forward.1} parent=1 // pred_region
      %87 = dma.done [#allocation5], 1024
    $region49: #{critic_forward.1} parent=1 // pred_fallthru
      _
    // Predicated region
    $region50: #{critic_forward.1} parent=1 // pred_check
      _
    $region51: #{critic_forward.1} parent=1 // pred_check_branch
      %89 = sbr.rel (0) target = $region53
    $region52: #{critic_forward.1} parent=1 // pred_region
      %90 = dma.done [#allocation5], 16
    $region53: #{critic_forward.1} parent=1 // pred_fallthru
      _
    // Predicated region
    $region54: #{critic_forward.1} parent=1 // pred_check
      _
    $region55: #{critic_forward.1} parent=1 // pred_check_branch
      %92 = sbr.rel (0) target = $region57
    $region56: #{critic_forward.1} parent=1 // pred_region
      %93 = dma.done [#allocation8], 1024
    $region57: #{critic_forward.1} parent=1 // pred_fallthru
      _
    // Predicated region
    $region58: #{critic_forward.1} parent=1 // pred_check
      _
    $region59: #{critic_forward.1} parent=1 // pred_check_branch
      %95 = sbr.rel (0) target = $region61
    $region60: #{critic_forward.1} parent=1 // pred_region
      %96 = dma.done [#allocation8], 16
    $region61: #{critic_forward.1} parent=1 // pred_fallthru
      _
    %v97 = vld [vmem:[%s0] sm:$0xff]
    %v98 = vld [vmem:[%s1] sm:$0xff]
    %v99 = vld [vmem:[%s2] sm:$0xff]
    %v100 = vld [vmem:[%s2 + $0x8] sm:$0xf]
    %v101 = vld [vmem:[%s3] sm:$0xf]
    %vm102 = vcmask 31744
    %v104 = vsel %vm102, %v98, 0
    %vm106 = vcmask 1043456
    %v108 = vsel %vm106, %v101, 0
    %110 = vmatprep.subr.mxu0 0.0
    %111 = vmatpush1.msra.mxu0 %v108
    %112 = vmatprep.subr.mxu0 0.0
    %113 = vmatpush1.msra.mxu0 0.0
    %114 = vmatprep.subr.mxu0 0.0
    %115 = vmatpush1.msra.mxu0 0.0
    %116 = vmatprep.subr.mxu0 0.0
    %117 = vmatpush1.msra.mxu0 0.0
    %118 = vmatprep.subr.mxu0 0.0
    %119 = vmatpush1.msra.mxu0 0.0
    %120 = vmatprep.subr.mxu0 0.0
    %121 = vmatpush1.msra.mxu0 0.0
    %122 = vmatprep.subr.mxu0 0.0
    %123 = vmatpush1.msra.mxu0 0.0
    %124 = vmatprep.subr.mxu0 0.0
    %125 = vmatpush1.msra.mxu0 0.0
    %126 = vmatprep.subr.mxu0 0.0
    %127 = vmatpush1.msra.mxu0 0.0
    %128 = vmatprep.subr.mxu0 0.0
    %129 = vmatpush1.msra.mxu0 0.0
    %130 = vmatprep.subr.mxu0 0.0
    %131 = vmatpush1.msra.mxu0 0.0
    %132 = vmatprep.subr.mxu0 0.0
    %133 = vmatpush1.msra.mxu0 0.0
    %134 = vmatprep.subr.mxu0 0.0
    %135 = vmatpush1.msra.mxu0 0.0
    %136 = vmatprep.subr.mxu0 0.0
    %137 = vmatpush1.msra.mxu0 0.0
    %138 = vmatprep.subr.mxu0 0.0
    %139 = vmatpush1.msra.mxu0 0.0
    %140 = vmatprep.subr.mxu0 0.0
    %141 = vmatpush1.msra.mxu0 0.0
    %142 = vmatprep.subr.mxu0 0.0
    %143 = vmatpush1.msra.mxu0 0.0
    %144 = vmatprep.subr.mxu0 0.0
    %145 = vmatpush1.msra.mxu0 0.0
    %146 = vmatprep.subr.mxu0 0.0
    %147 = vmatpush1.msra.mxu0 0.0
    %148 = vmatprep.subr.mxu0 0.0
    %149 = vmatpush1.msra.mxu0 0.0
    %150 = vmatprep.subr.mxu0 0.0
    %151 = vmatpush1.msra.mxu0 0.0
    %152 = vmatprep.subr.mxu0 0.0
    %153 = vmatpush1.msra.mxu0 0.0
    %154 = vmatprep.subr.mxu0 0.0
    %155 = vmatpush1.msra.mxu0 0.0
    %156 = vmatprep.subr.mxu0 0.0
    %157 = vmatpush1.msra.mxu0 0.0
    %158 = vmatprep.subr.mxu0 0.0
    %159 = vmatpush1.msra.mxu0 0.0
    %160 = vmatprep.subr.mxu0 0.0
    %161 = vmatpush1.msra.mxu0 0.0
    %162 = vmatprep.subr.mxu0 0.0
    %163 = vmatpush1.msra.mxu0 0.0
    %164 = vmatprep.subr.mxu0 0.0
    %165 = vmatpush1.msra.mxu0 0.0
    %166 = vmatprep.subr.mxu0 0.0
    %167 = vmatpush1.msra.mxu0 0.0
    %168 = vmatprep.subr.mxu0 0.0
    %169 = vmatpush1.msra.mxu0 0.0
    %170 = vmatprep.subr.mxu0 0.0
    %171 = vmatpush1.msra.mxu0 0.0
    %172 = vmatprep.subr.mxu0 0.0
    %173 = vmatpush1.msra.mxu0 0.0
    %174 = vmatprep.mubr.f32.mxu0 0.0
    %175 = vmatmul.mubr.f32.gmra.mrb[0].mxu0 %v104
    %v176 = vpop.f32.mrb[0].mxu0
    %v177 = vadd.f32 0.0, %v176
    %v178 = vpop.f32.mrb[0].mxu0
    %179 = vdwg.mxu0
    %vm180 = vcmask 97280
    %v182 = vsel %vm180, %v97, 0
    %v185 = vsel %vm106, %v100, 0
    %187 = vmatprep.subr.mxu0 0.0
    %188 = vmatpush1.msra.mxu0 %v99
    %189 = vmatprep.subr.mxu0 0.0
    %190 = vmatpush1.msra.mxu0 %v185
    %191 = vmatprep.subr.mxu0 0.0
    %192 = vmatpush1.msra.mxu0 0.0
    %193 = vmatprep.subr.mxu0 0.0
    %194 = vmatpush1.msra.mxu0 0.0
    %195 = vmatprep.subr.mxu0 0.0
    %196 = vmatpush1.msra.mxu0 0.0
    %197 = vmatprep.subr.mxu0 0.0
    %198 = vmatpush1.msra.mxu0 0.0
    %199 = vmatprep.subr.mxu0 0.0
    %200 = vmatpush1.msra.mxu0 0.0
    %201 = vmatprep.subr.mxu0 0.0
    %202 = vmatpush1.msra.mxu0 0.0
    %203 = vmatprep.subr.mxu0 0.0
    %204 = vmatpush1.msra.mxu0 0.0
    %205 = vmatprep.subr.mxu0 0.0
    %206 = vmatpush1.msra.mxu0 0.0
    %207 = vmatprep.subr.mxu0 0.0
    %208 = vmatpush1.msra.mxu0 0.0
    %209 = vmatprep.subr.mxu0 0.0
    %210 = vmatpush1.msra.mxu0 0.0
    %211 = vmatprep.subr.mxu0 0.0
    %212 = vmatpush1.msra.mxu0 0.0
    %213 = vmatprep.subr.mxu0 0.0
    %214 = vmatpush1.msra.mxu0 0.0
    %215 = vmatprep.subr.mxu0 0.0
    %216 = vmatpush1.msra.mxu0 0.0
    %217 = vmatprep.subr.mxu0 0.0
    %218 = vmatpush1.msra.mxu0 0.0
    %219 = vmatprep.subr.mxu0 0.0
    %220 = vmatpush1.msra.mxu0 0.0
    %221 = vmatprep.subr.mxu0 0.0
    %222 = vmatpush1.msra.mxu0 0.0
    %223 = vmatprep.subr.mxu0 0.0
    %224 = vmatpush1.msra.mxu0 0.0
    %225 = vmatprep.subr.mxu0 0.0
    %226 = vmatpush1.msra.mxu0 0.0
    %227 = vmatprep.subr.mxu0 0.0
    %228 = vmatpush1.msra.mxu0 0.0
    %229 = vmatprep.subr.mxu0 0.0
    %230 = vmatpush1.msra.mxu0 0.0
    %231 = vmatprep.subr.mxu0 0.0
    %232 = vmatpush1.msra.mxu0 0.0
    %233 = vmatprep.subr.mxu0 0.0
    %234 = vmatpush1.msra.mxu0 0.0
    %235 = vmatprep.subr.mxu0 0.0
    %236 = vmatpush1.msra.mxu0 0.0
    %237 = vmatprep.subr.mxu0 0.0
    %238 = vmatpush1.msra.mxu0 0.0
    %239 = vmatprep.subr.mxu0 0.0
    %240 = vmatpush1.msra.mxu0 0.0
    %241 = vmatprep.subr.mxu0 0.0
    %242 = vmatpush1.msra.mxu0 0.0
    %243 = vmatprep.subr.mxu0 0.0
    %244 = vmatpush1.msra.mxu0 0.0
    %245 = vmatprep.subr.mxu0 0.0
    %246 = vmatpush1.msra.mxu0 0.0
    %247 = vmatprep.subr.mxu0 0.0
    %248 = vmatpush1.msra.mxu0 0.0
    %249 = vmatprep.subr.mxu0 0.0
    %250 = vmatpush1.msra.mxu0 0.0
    %251 = vmatprep.mubr.f32.mxu0 0.0
    %252 = vmatmul.mubr.f32.gmra.mrb[0].mxu0 %v182
    %v253 = vpop.f32.mrb[0].mxu0
    %v254 = vadd.f32 %v177, %v253
    %v255 = vpop.f32.mrb[0].mxu0
    %256 = vdwg.mxu0
    %v257 = vld [vmem:[#allocation2] sm:$0x1]
    %v259 = vlaneseq
    %v260 = vshrl.u32 %v259, 7
    %v261 = vsub.s32 0, %v260
    %v262 = vrot.slane %v257, %v261
    %v264 = vadd.f32 %v254, %v262
    %v265 = vmin.f32 %v264, 20.0
    %v266 = vmul.f32 %v265, 1.442695
    %v267 = vpow.pop %v266
    %v268 = vadd.f32 %v267, 2.0
    %v269 = vmul.f32 %v267, %v268
    %v270 = vadd.f32 %v269, 2.0
    %v271 = vrcp.pop %v270
    %v272 = vmul.f32 %v269, %v271
    %vm273 = vcmp.gt.f32.partialorder %v264, 20.0
    %v274 = vsel %vm273, 1.0, %v272
    %v275 = vmul.f32 %v264, %v274
    %v276 = vld [vmem:[#allocation4] sm:$0xff]
    %v277 = vld [vmem:[#allocation4 + $0x8] sm:$0xff]
    %v278 = vld [vmem:[#allocation4 + $0x10] sm:$0xff]
    %v279 = vld [vmem:[#allocation4 + $0x18] sm:$0xff]
    %v280 = vld [vmem:[#allocation4 + $0x20] sm:$0xff]
    %v281 = vld [vmem:[#allocation4 + $0x28] sm:$0xff]
    %v282 = vld [vmem:[#allocation4 + $0x30] sm:$0xff]
    %v283 = vld [vmem:[#allocation4 + $0x38] sm:$0xff]
    %v284 = vld [vmem:[#allocation6] sm:$0x1]
    %v286 = vlaneseq
    %v287 = vshrl.u32 %v286, 7
    %v288 = vsub.s32 0, %v287
    %v289 = vrot.slane %v284, %v288
    %vm291 = vcmask 523264
    %v293 = vsel %vm291, %v275, 0
    %295 = vmatprep.subr.mxu0 0.0
    %296 = vmatpush1.msra.mxu0 %v276
    %297 = vmatprep.subr.mxu0 0.0
    %298 = vmatpush1.msra.mxu0 %v277
    %299 = vmatprep.subr.mxu0 0.0
    %300 = vmatpush1.msra.mxu0 %v278
    %301 = vmatprep.subr.mxu0 0.0
    %302 = vmatpush1.msra.mxu0 %v279
    %303 = vmatprep.subr.mxu0 0.0
    %304 = vmatpush1.msra.mxu0 %v280
    %305 = vmatprep.subr.mxu0 0.0
    %306 = vmatpush1.msra.mxu0 %v281
    %307 = vmatprep.subr.mxu0 0.0
    %308 = vmatpush1.msra.mxu0 %v282
    %309 = vmatprep.subr.mxu0 0.0
    %310 = vmatpush1.msra.mxu0 %v283
    %311 = vmatprep.subr.mxu0 0.0
    %312 = vmatpush1.msra.mxu0 0.0
    %313 = vmatprep.subr.mxu0 0.0
    %314 = vmatpush1.msra.mxu0 0.0
    %315 = vmatprep.subr.mxu0 0.0
    %316 = vmatpush1.msra.mxu0 0.0
    %317 = vmatprep.subr.mxu0 0.0
    %318 = vmatpush1.msra.mxu0 0.0
    %319 = vmatprep.subr.mxu0 0.0
    %320 = vmatpush1.msra.mxu0 0.0
    %321 = vmatprep.subr.mxu0 0.0
    %322 = vmatpush1.msra.mxu0 0.0
    %323 = vmatprep.subr.mxu0 0.0
    %324 = vmatpush1.msra.mxu0 0.0
    %325 = vmatprep.subr.mxu0 0.0
    %326 = vmatpush1.msra.mxu0 0.0
    %327 = vmatprep.subr.mxu0 0.0
    %328 = vmatpush1.msra.mxu0 0.0
    %329 = vmatprep.subr.mxu0 0.0
    %330 = vmatpush1.msra.mxu0 0.0
    %331 = vmatprep.subr.mxu0 0.0
    %332 = vmatpush1.msra.mxu0 0.0
    %333 = vmatprep.subr.mxu0 0.0
    %334 = vmatpush1.msra.mxu0 0.0
    %335 = vmatprep.subr.mxu0 0.0
    %336 = vmatpush1.msra.mxu0 0.0
    %337 = vmatprep.subr.mxu0 0.0
    %338 = vmatpush1.msra.mxu0 0.0
    %339 = vmatprep.subr.mxu0 0.0
    %340 = vmatpush1.msra.mxu0 0.0
    %341 = vmatprep.subr.mxu0 0.0
    %342 = vmatpush1.msra.mxu0 0.0
    %343 = vmatprep.subr.mxu0 0.0
    %344 = vmatpush1.msra.mxu0 0.0
    %345 = vmatprep.subr.mxu0 0.0
    %346 = vmatpush1.msra.mxu0 0.0
    %347 = vmatprep.subr.mxu0 0.0
    %348 = vmatpush1.msra.mxu0 0.0
    %349 = vmatprep.subr.mxu0 0.0
    %350 = vmatpush1.msra.mxu0 0.0
    %351 = vmatprep.subr.mxu0 0.0
    %352 = vmatpush1.msra.mxu0 0.0
    %353 = vmatprep.subr.mxu0 0.0
    %354 = vmatpush1.msra.mxu0 0.0
    %355 = vmatprep.subr.mxu0 0.0
    %356 = vmatpush1.msra.mxu0 0.0
    %357 = vmatprep.subr.mxu0 0.0
    %358 = vmatpush1.msra.mxu0 0.0
    %359 = vmatprep.mubr.f32.mxu0 0.0
    %360 = vmatmul.mubr.f32.gmra.mrb[0].mxu0 %v293
    %v361 = vpop.f32.mrb[0].mxu0
    %v362 = vadd.f32 %v289, %v361
    %v363 = vpop.f32.mrb[0].mxu0
    %364 = vdwg.mxu0
    %v365 = vmin.f32 %v362, 20.0
    %v366 = vmul.f32 %v365, 1.442695
    %v367 = vpow.pop %v366
    %v368 = vadd.f32 %v367, 2.0
    %v369 = vmul.f32 %v367, %v368
    %v370 = vadd.f32 %v369, 2.0
    %v371 = vrcp.pop %v370
    %v372 = vmul.f32 %v369, %v371
    %vm373 = vcmp.gt.f32.partialorder %v362, 20.0
    %v374 = vsel %vm373, 1.0, %v372
    %v375 = vmul.f32 %v362, %v374
    %v376 = vld [vmem:[#allocation7] sm:$0xff]
    %v377 = vld [vmem:[#allocation7 + $0x8] sm:$0xff]
    %v378 = vld [vmem:[#allocation7 + $0x10] sm:$0xff]
    %v379 = vld [vmem:[#allocation7 + $0x18] sm:$0xff]
    %v380 = vld [vmem:[#allocation7 + $0x20] sm:$0xff]
    %v381 = vld [vmem:[#allocation7 + $0x28] sm:$0xff]
    %v382 = vld [vmem:[#allocation7 + $0x30] sm:$0xff]
    %v383 = vld [vmem:[#allocation7 + $0x38] sm:$0xff]
    %v384 = vld [vmem:[#allocation9] sm:$0x1]
    %v386 = vlaneseq
    %v387 = vshrl.u32 %v386, 7
    %v388 = vsub.s32 0, %v387
    %v389 = vrot.slane %v384, %v388
    %v392 = vsel %vm291, %v375, 0
    %394 = vmatprep.subr.mxu0 0.0
    %395 = vmatpush1.msra.mxu0 %v376
    %396 = vmatprep.subr.mxu0 0.0
    %397 = vmatpush1.msra.mxu0 %v377
    %398 = vmatprep.subr.mxu0 0.0
    %399 = vmatpush1.msra.mxu0 %v378
    %400 = vmatprep.subr.mxu0 0.0
    %401 = vmatpush1.msra.mxu0 %v379
    %402 = vmatprep.subr.mxu0 0.0
    %403 = vmatpush1.msra.mxu0 %v380
    %404 = vmatprep.subr.mxu0 0.0
    %405 = vmatpush1.msra.mxu0 %v381
    %406 = vmatprep.subr.mxu0 0.0
    %407 = vmatpush1.msra.mxu0 %v382
    %408 = vmatprep.subr.mxu0 0.0
    %409 = vmatpush1.msra.mxu0 %v383
    %410 = vmatprep.subr.mxu0 0.0
    %411 = vmatpush1.msra.mxu0 0.0
    %412 = vmatprep.subr.mxu0 0.0
    %413 = vmatpush1.msra.mxu0 0.0
    %414 = vmatprep.subr.mxu0 0.0
    %415 = vmatpush1.msra.mxu0 0.0
    %416 = vmatprep.subr.mxu0 0.0
    %417 = vmatpush1.msra.mxu0 0.0
    %418 = vmatprep.subr.mxu0 0.0
    %419 = vmatpush1.msra.mxu0 0.0
    %420 = vmatprep.subr.mxu0 0.0
    %421 = vmatpush1.msra.mxu0 0.0
    %422 = vmatprep.subr.mxu0 0.0
    %423 = vmatpush1.msra.mxu0 0.0
    %424 = vmatprep.subr.mxu0 0.0
    %425 = vmatpush1.msra.mxu0 0.0
    %426 = vmatprep.subr.mxu0 0.0
    %427 = vmatpush1.msra.mxu0 0.0
    %428 = vmatprep.subr.mxu0 0.0
    %429 = vmatpush1.msra.mxu0 0.0
    %430 = vmatprep.subr.mxu0 0.0
    %431 = vmatpush1.msra.mxu0 0.0
    %432 = vmatprep.subr.mxu0 0.0
    %433 = vmatpush1.msra.mxu0 0.0
    %434 = vmatprep.subr.mxu0 0.0
    %435 = vmatpush1.msra.mxu0 0.0
    %436 = vmatprep.subr.mxu0 0.0
    %437 = vmatpush1.msra.mxu0 0.0
    %438 = vmatprep.subr.mxu0 0.0
    %439 = vmatpush1.msra.mxu0 0.0
    %440 = vmatprep.subr.mxu0 0.0
    %441 = vmatpush1.msra.mxu0 0.0
    %442 = vmatprep.subr.mxu0 0.0
    %443 = vmatpush1.msra.mxu0 0.0
    %444 = vmatprep.subr.mxu0 0.0
    %445 = vmatpush1.msra.mxu0 0.0
    %446 = vmatprep.subr.mxu0 0.0
    %447 = vmatpush1.msra.mxu0 0.0
    %448 = vmatprep.subr.mxu0 0.0
    %449 = vmatpush1.msra.mxu0 0.0
    %450 = vmatprep.subr.mxu0 0.0
    %451 = vmatpush1.msra.mxu0 0.0
    %452 = vmatprep.subr.mxu0 0.0
    %453 = vmatpush1.msra.mxu0 0.0
    %454 = vmatprep.subr.mxu0 0.0
    %455 = vmatpush1.msra.mxu0 0.0
    %456 = vmatprep.subr.mxu0 0.0
    %457 = vmatpush1.msra.mxu0 0.0
    %458 = vmatprep.mubr.f32.mxu0 0.0
    %459 = vmatmul.mubr.f32.gmra.mrb[0].mxu0 %v392
    %v460 = vpop.f32.mrb[0].mxu0
    %v461 = vadd.f32 %v389, %v460
    %v462 = vpop.f32.mrb[0].mxu0
    %463 = vdwg.mxu0
    %v464 = vmin.f32 %v461, 20.0
    %v465 = vmul.f32 %v464, 1.442695
    %v466 = vpow.pop %v465
    %v467 = vadd.f32 %v466, 2.0
    %v468 = vmul.f32 %v466, %v467
    %v469 = vadd.f32 %v468, 2.0
    %v470 = vrcp.pop %v469
    %v471 = vmul.f32 %v468, %v470
    %vm472 = vcmp.gt.f32.partialorder %v461, 20.0
    %v473 = vsel %vm472, 1.0, %v471
    %v474 = vmul.f32 %v461, %v473
    %v475 = vld [vmem:[%s9] sm:$0x3]
    %v476 = vlaneseq
    %v477 = vshrl.u32 %v476, 7
    %v478 = vsub.s32 0, %v477
    %v479 = vrot.slane %v475, %v478
    %v480 = vmul.f32 %v474, %v479
    %v481 = vsel %vm291, %v480, 0.0
    %482 = vadd.xlane.f32.xlu0 %v481
    %v483 = vpop.xlane.xlu0 %482
    %v484 = vlaneseq
    %v485 = vshrl.u32 %v484, 7
    %v486 = vsub.s32 1, %v485
    %v487 = vrot.slane %v475, %v486
    %v488 = vmul.f32 %v474, %v487
    %v489 = vsel %vm291, %v488, 0.0
    %490 = vadd.xlane.f32.xlu0 %v489
    %v491 = vpop.xlane.xlu0 %490
    %vm492 = vcmask 7168
    %v493 = vsel %vm492, %v483, %v491
    %vm494 = vcmask 15360
    %495 = vst.msk [vmem:[%s10] sm:$0xff] %vm494, %v493
    // Predicated region
    $region62: #{critic_forward.1} parent=1 // pred_check
      _
    $region63: #{critic_forward.1} parent=1 // pred_check_branch
      %497 = sbr.rel (0) target = $region65
    $region64: #{critic_forward.1} parent=1 // pred_region
      _
    $region65: #{critic_forward.1} parent=1 // pred_fallthru
      _
    // Predicated region
    $region66: #{critic_forward.1} parent=1 // pred_check
      _
    $region67: #{critic_forward.1} parent=1 // pred_check_branch
      %499 = sbr.rel (0) target = $region69
    $region68: #{critic_forward.1} parent=1 // pred_region
      _
    $region69: #{critic_forward.1} parent=1 // pred_fallthru
      _
    %500 = vsyncpa [#allocation3], 1
    %501 = vsyncpa [#allocation5], 1
    %502 = vsyncpa [#allocation8], 1

</llo_original>
